<compile_context>
chip_gen: v6e
topology: v6e:2x2x1
jax: 0.10.0
libtpu: 0.0.40
codegen_flags: <defaults>
</compile_context>

<pallas_src>
import jax
import jax.numpy as jnp
from jax.experimental import pallas as pl
from jax.experimental.pallas import tpu as pltpu

M = 32            # latent dim
H = 128           # decoder hidden dim
D = 28 * 28       # 784 output features (28 x 28 image)
D_PAD = 896       # 784 padded to 7*128 for lane-dense stores
BT = 8            # batch tile (rows per grid step), multiple of 8
PAD_BIAS = -30.0  # poison bias for the 112 padded output columns


# ----------------------------------------------------------------------------
# Shared in-kernel helpers.
# ----------------------------------------------------------------------------
def _decode_logits(z_ref, w1_ref, b1_ref, w2_ref, b2_ref):
    """MLP: Linear(M,H) -> ReLU -> Linear(H,D_PAD).  bf16 MXU, f32 accumulate."""
    z_bf = z_ref[...].astype(jnp.bfloat16)
    h = jnp.dot(z_bf, w1_ref[...], preferred_element_type=jnp.float32)
    h = jnp.maximum(h + b1_ref[...], 0.0)
    logits = jnp.dot(h.astype(jnp.bfloat16), w2_ref[...],
                     preferred_element_type=jnp.float32)
    return logits + b2_ref[...]


def _sigmoid_from_e(logits, e):
    """Exact, numerically-stable sigmoid given e = exp(-|logits|)."""
    r = 1.0 / (1.0 + e)                     # exact f32 reciprocal
    return jnp.where(logits >= 0, r, e * r)


# ----------------------------------------------------------------------------
# Kernel 1: forward() -> Bernoulli distribution parameters (logits, probs).
# ----------------------------------------------------------------------------
def decoder_kernel(z_ref, w1_ref, b1_ref, w2_ref, b2_ref, logits_ref, probs_ref):
    logits = _decode_logits(z_ref, w1_ref, b1_ref, w2_ref, b2_ref)
    e = jnp.exp(-jnp.abs(logits))
    logits_ref[...] = logits
    probs_ref[...] = _sigmoid_from_e(logits, e)


# ----------------------------------------------------------------------------
# Kernel 2 (fused): forward() + Independent(Bernoulli, 2).log_prob(x),
# single launch, padded (Bt, D_PAD) slab throughout, exp shared between
# sigmoid and softplus, no pad mask (poison-bias padding).
# ----------------------------------------------------------------------------
def decoder_logprob_kernel(z_ref, x_ref, w1_ref, b1_ref, w2_ref, b2_ref,
                           logits_ref, probs_ref, lp_ref):
    logits = _decode_logits(z_ref, w1_ref, b1_ref, w2_ref, b2_ref)
    e = jnp.exp(-jnp.abs(logits))                      # single EUP pass, reused
    logits_ref[...] = logits
    probs_ref[...] = _sigmoid_from_e(logits, e)
    softplus = jnp.maximum(logits, 0.0) + jnp.log1p(e)
    # pad columns: x == 0 and softplus(PAD_BIAS) ~= 0 -> contribute ~0 to the sum.
    per_elem = x_ref[...] * logits - softplus
    lp_ref[...] = jnp.sum(per_elem, axis=-1, keepdims=True)


# ----------------------------------------------------------------------------
# Wrappers (batch-blocked grid, weights broadcast to every step).
# ----------------------------------------------------------------------------
_W_SPECS = [
    pl.BlockSpec((M, H), lambda i: (0, 0)),
    pl.BlockSpec((1, H), lambda i: (0, 0)),
    pl.BlockSpec((H, D_PAD), lambda i: (0, 0)),
    pl.BlockSpec((1, D_PAD), lambda i: (0, 0)),
]


def pad_x(x_2828):
    """Flatten + zero-pad observations ONCE (outside the per-call hot path)."""
    b = x_2828.shape[0]
    return jnp.pad(x_2828.reshape(b, D).astype(jnp.float32),
                   ((0, 0), (0, D_PAD - D)))


def decoder_forward(z, w1, b1, w2, b2, *, bt=BT):
    """Returns (logits, probs), each (B, 28, 28) float32."""
    b = z.shape[0]
    assert b % bt == 0
    out_spec = pl.BlockSpec((bt, D_PAD), lambda i: (i, 0))
    logits_pad, probs_pad = pl.pallas_call(
        decoder_kernel,
        out_shape=(
            jax.ShapeDtypeStruct((b, D_PAD), jnp.float32),
            jax.ShapeDtypeStruct((b, D_PAD), jnp.float32),
        ),
        grid_spec=pltpu.PrefetchScalarGridSpec(
            num_scalar_prefetch=0,
            grid=(b // bt,),
            in_specs=[pl.BlockSpec((bt, M), lambda i: (i, 0))] + _W_SPECS,
            out_specs=(out_spec, out_spec),
        ),
        compiler_params=pltpu.CompilerParams(
            dimension_semantics=("parallel",)),
    )(z, w1, b1, w2, b2)
    # Single unpad/reshape at the boundary only.
    return (logits_pad[:, :D].reshape(b, 28, 28),
            probs_pad[:, :D].reshape(b, 28, 28))


def decoder_forward_and_log_prob(z, x_pad, w1, b1, w2, b2, *, bt=BT):
    """Fused: returns (logits (B,28,28), probs (B,28,28), log_prob (B,)).

    x_pad must be the pre-padded (B, D_PAD) float32 slab (see pad_x)."""
    b = z.shape[0]
    assert b % bt == 0 and x_pad.shape == (b, D_PAD)
    out_spec = pl.BlockSpec((bt, D_PAD), lambda i: (i, 0))
    logits_pad, probs_pad, lp = pl.pallas_call(
        decoder_logprob_kernel,
        out_shape=(
            jax.ShapeDtypeStruct((b, D_PAD), jnp.float32),
            jax.ShapeDtypeStruct((b, D_PAD), jnp.float32),
            jax.ShapeDtypeStruct((b, 1), jnp.float32),
        ),
        grid_spec=pltpu.PrefetchScalarGridSpec(
            num_scalar_prefetch=0,
            grid=(b // bt,),
            in_specs=[pl.BlockSpec((bt, M), lambda i: (i, 0)),
                      out_spec] + _W_SPECS,
            out_specs=(out_spec, out_spec,
                       pl.BlockSpec((bt, 1), lambda i: (i, 0))),
        ),
        compiler_params=pltpu.CompilerParams(
            dimension_semantics=("parallel",)),
    )(z, x_pad, w1, b1, w2, b2)
    return (logits_pad[:, :D].reshape(b, 28, 28),
            probs_pad[:, :D].reshape(b, 28, 28),
            lp[:, 0])


# ----------------------------------------------------------------------------
# Parameter construction (mimics nn.Linear default init scale).
# Weights are stored bf16 (native MXU input), biases f32.
# b2 pad columns get PAD_BIAS so log_prob needs no in-kernel mask.
# ----------------------------------------------------------------------------
def init_params(key):
    k1, k2, k3, k4 = jax.random.split(key, 4)
    lim1 = 1.0 / jnp.sqrt(M)
    lim2 = 1.0 / jnp.sqrt(H)
    w1 = jax.random.uniform(k1, (M, H), jnp.float32, -lim1, lim1)
    b1 = jax.random.uniform(k2, (1, H), jnp.float32, -lim1, lim1)
    w2_784 = jax.random.uniform(k3, (H, D), jnp.float32, -lim2, lim2)
    b2_784 = jax.random.uniform(k4, (1, D), jnp.float32, -lim2, lim2)
    # pad output features 784 -> 896: zero weights, poison bias.
    w2 = jnp.zeros((H, D_PAD), jnp.float32).at[:, :D].set(w2_784)
    b2 = jnp.full((1, D_PAD), PAD_BIAS, jnp.float32).at[:, :D].set(b2_784)
    # self.logvars: nn.Parameter (28, 28) init 0.5 — unused in forward(), kept for parity.
    logvars = jnp.ones((28, 28), jnp.float32) * 0.5
    return (w1.astype(jnp.bfloat16), b1,
            w2.astype(jnp.bfloat16), b2, logvars)


if __name__ == "__main__":
    B = 16  # batch; grid = (B // BT,) = (2,) exercises the parallel batch axis
    key = jax.random.PRNGKey(0)
    kz, kx, kp = jax.random.split(key, 3)

    w1, b1, w2, b2, logvars = init_params(kp)

    # forward input: batch of latents (B, M)
    z = jax.random.normal(kz, (B, M), jnp.float32)

    # forward(): build the Bernoulli distribution parameters
    logits, probs = decoder_forward(z, w1, b1, w2, b2)
    logits = jax.block_until_ready(logits)
    probs = jax.block_until_ready(probs)

    # fused forward + Independent(Bernoulli, 2).log_prob on a binary observation
    x = (jax.random.uniform(kx, (B, 28, 28)) > 0.5).astype(jnp.float32)
    x_pad = pad_x(x)   # pre-padded once, reused across calls
    logits_f, probs_f, lp = decoder_forward_and_log_prob(z, x_pad, w1, b1, w2, b2)
    lp = jax.block_until_ready(lp)

    # --- reference checks -----------------------------------------------------
    h_ref = jnp.maximum(
        jnp.dot(z.astype(jnp.bfloat16), w1,
                preferred_element_type=jnp.float32) + b1, 0.0)
    logits_ref = (jnp.dot(h_ref.astype(jnp.bfloat16), w2,
                          preferred_element_type=jnp.float32) + b2)[:, :D]
    lp_ref = jnp.sum(
        x.reshape(B, D) * logits_ref
        - (jnp.maximum(logits_ref, 0.0) + jnp.log1p(jnp.exp(-jnp.abs(logits_ref)))),
        axis=-1)

    assert logits.shape == (B, 28, 28)
    assert probs.shape == (B, 28, 28)
    assert lp.shape == (B,)
    assert bool(jnp.all(jnp.isfinite(logits)))
    assert bool(jnp.all((probs >= 0.0) & (probs <= 1.0)))
    assert bool(jnp.allclose(logits.reshape(B, D), logits_ref, rtol=2e-2, atol=2e-2))
    assert bool(jnp.allclose(logits_f, logits, rtol=1e-5, atol=1e-5))
    assert bool(jnp.allclose(probs_f, probs, rtol=1e-5, atol=1e-6))
    assert bool(jnp.allclose(lp, lp_ref, rtol=1e-3, atol=1e-2))
    assert bool(jnp.allclose(probs, jax.nn.sigmoid(logits), rtol=1e-5, atol=1e-6))

    # TODO(synk): the torch module returns a td.Independent(td.Bernoulli) object;
    # here we return its parameters (logits, probs) and a fused log_prob instead.
    print("KERNEL_OK")
</pallas_src>

<mosaic_0001>
module attributes {stable_mosaic.version = 11 : i64} {
  func.func @decoder_kernel(%arg0: i32, %arg1: memref<8x32xf32, #tpu.memory_space<vmem>>, %arg2: memref<32x128xbf16, #tpu.memory_space<vmem>>, %arg3: memref<1x128xf32, #tpu.memory_space<vmem>>, %arg4: memref<128x896xbf16, #tpu.memory_space<vmem>>, %arg5: memref<1x896xf32, #tpu.memory_space<vmem>>, %arg6: memref<8x896xf32, #tpu.memory_space<vmem>>, %arg7: memref<8x896xf32, #tpu.memory_space<vmem>>) attributes {dimension_semantics = [#tpu.dimension_semantics<parallel>], iteration_bounds = array<i64: 2>, scalar_prefetch = 0 : i64, scratch_operands = 0 : i64, tpu.core_type = #tpu.core_type<tc>, window_params = [{transform_indices = @transform_0, window_bounds = array<i64: 8, 32>}, {pipeline_mode = #tpu.pipeline_mode<synchronous>, transform_indices = @transform_1, window_bounds = array<i64: 32, 128>}, {pipeline_mode = #tpu.pipeline_mode<synchronous>, transform_indices = @transform_2, window_bounds = array<i64: 1, 128>}, {pipeline_mode = #tpu.pipeline_mode<synchronous>, transform_indices = @transform_3, window_bounds = array<i64: 128, 896>}, {pipeline_mode = #tpu.pipeline_mode<synchronous>, transform_indices = @transform_4, window_bounds = array<i64: 1, 896>}, {transform_indices = @transform_5, window_bounds = array<i64: 8, 896>}, {transform_indices = @transform_6, window_bounds = array<i64: 8, 896>}]} {
    %c0 = arith.constant 0 : index
    %c0_0 = arith.constant 0 : index
    %0 = vector.load %arg1[%c0, %c0_0] : memref<8x32xf32, #tpu.memory_space<vmem>>, vector<8x32xf32>
    %1 = arith.truncf %0 : vector<8x32xf32> to vector<8x32xbf16>
    %c0_1 = arith.constant 0 : index
    %c0_2 = arith.constant 0 : index
    %2 = vector.load %arg2[%c0_1, %c0_2] : memref<32x128xbf16, #tpu.memory_space<vmem>>, vector<32x128xbf16>
    %cst = arith.constant dense<0.000000e+00> : vector<8x128xf32>
    %3 = tpu.matmul %1, %2, %cst {dimension_numbers = #tpu.dot_dimension_numbers<[1], [0], [0], [1], [0, 0, 1, 1], [], []>} : vector<8x32xbf16>, vector<32x128xbf16>, vector<8x128xf32> -> vector<8x128xf32>
    %c0_3 = arith.constant 0 : index
    %c0_4 = arith.constant 0 : index
    %4 = vector.load %arg3[%c0_3, %c0_4] : memref<1x128xf32, #tpu.memory_space<vmem>>, vector<1x128xf32>
    %5 = vector.broadcast %4 : vector<1x128xf32> to vector<8x128xf32>
    %6 = arith.addf %3, %5 : vector<8x128xf32>
    %cst_5 = arith.constant 0.000000e+00 : f32
    %7 = vector.broadcast %cst_5 : f32 to vector<8x128xf32>
    %8 = arith.maximumf %6, %7 : vector<8x128xf32>
    %9 = arith.truncf %8 : vector<8x128xf32> to vector<8x128xbf16>
    %c0_6 = arith.constant 0 : index
    %c0_7 = arith.constant 0 : index
    %10 = vector.load %arg4[%c0_6, %c0_7] : memref<128x896xbf16, #tpu.memory_space<vmem>>, vector<128x896xbf16>
    %cst_8 = arith.constant dense<0.000000e+00> : vector<8x896xf32>
    %11 = tpu.matmul %9, %10, %cst_8 {dimension_numbers = #tpu.dot_dimension_numbers<[1], [0], [0], [1], [0, 0, 1, 1], [], []>} : vector<8x128xbf16>, vector<128x896xbf16>, vector<8x896xf32> -> vector<8x896xf32>
    %c0_9 = arith.constant 0 : index
    %c0_10 = arith.constant 0 : index
    %12 = vector.load %arg5[%c0_9, %c0_10] : memref<1x896xf32, #tpu.memory_space<vmem>>, vector<1x896xf32>
    %13 = vector.broadcast %12 : vector<1x896xf32> to vector<8x896xf32>
    %14 = arith.addf %11, %13 : vector<8x896xf32>
    %15 = math.absf %14 : vector<8x896xf32>
    %cst_11 = arith.constant 0.000000e+00 : f32
    %16 = vector.broadcast %cst_11 : f32 to vector<8x896xf32>
    %17 = arith.subf %16, %15 : vector<8x896xf32>
    %18 = math.exp %17 : vector<8x896xf32>
    %c0_12 = arith.constant 0 : index
    %c0_13 = arith.constant 0 : index
    %19 = vector.load %arg6[%c0_12, %c0_13] : memref<8x896xf32, #tpu.memory_space<vmem>>, vector<8x896xf32>
    tpu.vector_store %arg6[%c0_12, %c0_13], %14 {strides = array<i32>} : memref<8x896xf32, #tpu.memory_space<vmem>>, vector<8x896xf32>,
    %cst_14 = arith.constant 1.000000e+00 : f32
    %20 = vector.broadcast %cst_14 : f32 to vector<8x896xf32>
    %21 = arith.addf %20, %18 : vector<8x896xf32>
    %cst_15 = arith.constant 1.000000e+00 : f32
    %22 = vector.broadcast %cst_15 : f32 to vector<8x896xf32>
    %23 = arith.divf %22, %21 : vector<8x896xf32>
    %cst_16 = arith.constant 0.000000e+00 : f32
    %24 = vector.broadcast %cst_16 : f32 to vector<8x896xf32>
    %25 = arith.cmpf oge, %14, %24 : vector<8x896xf32>
    %26 = arith.mulf %18, %23 : vector<8x896xf32>
    %27 = arith.select %25, %23, %26 : vector<8x896xi1>, vector<8x896xf32>
    %c0_17 = arith.constant 0 : index
    %c0_18 = arith.constant 0 : index
    %28 = vector.load %arg7[%c0_17, %c0_18] : memref<8x896xf32, #tpu.memory_space<vmem>>, vector<8x896xf32>
    tpu.vector_store %arg7[%c0_17, %c0_18], %27 {strides = array<i32>} : memref<8x896xf32, #tpu.memory_space<vmem>>, vector<8x896xf32>,
    return
  }
  func.func @transform_0(%arg0: i32) -> (i32, i32) {
    %c0_i32 = arith.constant 0 : i32
    %c0_i32_0 = arith.constant 0 : i32
    return %arg0, %c0_i32 : i32, i32
  }
  func.func @transform_1(%arg0: i32) -> (i32, i32) {
    %c0_i32 = arith.constant 0 : i32
    %c0_i32_0 = arith.constant 0 : i32
    %c0_i32_1 = arith.constant 0 : i32
    return %c0_i32, %c0_i32_0 : i32, i32
  }
  func.func @transform_2(%arg0: i32) -> (i32, i32) {
    %c0_i32 = arith.constant 0 : i32
    %c0_i32_0 = arith.constant 0 : i32
    %c0_i32_1 = arith.constant 0 : i32
    return %c0_i32, %c0_i32_0 : i32, i32
  }
  func.func @transform_3(%arg0: i32) -> (i32, i32) {
    %c0_i32 = arith.constant 0 : i32
    %c0_i32_0 = arith.constant 0 : i32
    %c0_i32_1 = arith.constant 0 : i32
    return %c0_i32, %c0_i32_0 : i32, i32
  }
  func.func @transform_4(%arg0: i32) -> (i32, i32) {
    %c0_i32 = arith.constant 0 : i32
    %c0_i32_0 = arith.constant 0 : i32
    %c0_i32_1 = arith.constant 0 : i32
    return %c0_i32, %c0_i32_0 : i32, i32
  }
  func.func @transform_5(%arg0: i32) -> (i32, i32) {
    %c0_i32 = arith.constant 0 : i32
    %c0_i32_0 = arith.constant 0 : i32
    return %arg0, %c0_i32 : i32, i32
  }
  func.func @transform_6(%arg0: i32) -> (i32, i32) {
    %c0_i32 = arith.constant 0 : i32
    %c0_i32_0 = arith.constant 0 : i32
    return %arg0, %c0_i32 : i32, i32
  }
}

</mosaic_0001>

<llo_original>
// kernel: tpu_custom_call.1
$region0: #{tpu_custom_call.1}
  #allocation0 [shape = 'u32[]', space=smem, size = 0x4, offset = 0x4, fixed_abs, tag = 'smem constant byte address 0x4 - core index']
  #allocation1 [shape = 'u32[144,128]{1,0:T(1,128)}', space=vmem, size = 0x12000, scoped, tag = 'internal scratch']
  %s0 = inlined_call_operand.hbm [shape: f32[16,32], index: 0, kind: input, shape index: {}]
  %s1 = inlined_call_operand.hbm [shape: bf16[32,128], index: 1, kind: input, shape index: {}]
  %s2 = inlined_call_operand.hbm [shape: f32[1,128], index: 2, kind: input, shape index: {}]
  %s3 = inlined_call_operand.hbm [shape: bf16[128,896], index: 3, kind: input, shape index: {}]
  %s4 = inlined_call_operand.vmem [shape: f32[1,896], index: 4, kind: input, shape index: {}]
  %s5 = inlined_call_operand.hbm [shape: f32[16,896], index: 5, kind: output, shape index: {0}]
  %s6 = inlined_call_operand.hbm [shape: f32[16,896], index: 6, kind: output, shape index: {1}]
  %7 = xla_tuple %s5, %s6
  %s8 = sld [smem:[#allocation0]]
  $region77: #{tpu_custom_call.1} parent=0
    _
  %s10 = ssub.s32 1, %s8
  %s11 = scalar_select 0, %s10, %s8
  $region1: #{tpu_custom_call.1} parent=0
    #allocation2 [shape = 'u8[8192]{0}', space=vmem, size = 0x2000, scoped, tag = 'input window, operand 0']
    #allocation3 [shape = 's32[2]{0}', space=sflag, size = 0x8, scoped, tag = 'scoped memory for tpu_custom_call.1']
    #allocation4 [shape = 's32[2]{0}', space=sflag, size = 0x8, scoped, tag = 'scoped memory for tpu_custom_call.1']
    #allocation5 [shape = 'u8[8192]{0}', space=vmem, size = 0x2000, scoped, tag = 'input window, operand 1, single buffered']
    #allocation6 [shape = 's32[1]{0}', space=sflag, size = 0x4, scoped, tag = 'scoped memory for tpu_custom_call.1']
    #allocation7 [shape = 'u8[512]{0}', space=vmem, size = 0x400, scoped, tag = 'input window, operand 2, single buffered']
    #allocation8 [shape = 'u8[229376]{0}', space=vmem, size = 0x38000, scoped, tag = 'input window, operand 3, single buffered']
    #allocation9 [shape = 's32[1]{0}', space=sflag, size = 0x4, scoped, tag = 'scoped memory for tpu_custom_call.1']
    #allocation10 [shape = 'u8[57344]{0}', space=vmem, size = 0xe000, scoped, tag = 'output window, operand 0']
    #allocation11 [shape = 'u8[57344]{0}', space=vmem, size = 0xe000, scoped, tag = 'output window, operand 1']
    #allocation12 [shape = 's32[2]{0}', space=sflag, size = 0x8, scoped, tag = 'scoped memory for tpu_custom_call.1']
    %12 = vsyncpa [#allocation3], 0
    %s13 = scalar_lea.sflag [#allocation3], 1
    %14 = vsyncpa %s13, 0
    %15 = vsyncpa [#allocation6], 0
    %16 = vsyncpa [#allocation9], 0
    %17 = vsyncpa [#allocation4], 0
    %s18 = scalar_lea.sflag [#allocation4], 1
    %19 = vsyncpa %s18, 0
    %20 = vsyncpa [#allocation12], 0
    %s21 = scalar_lea.sflag [#allocation12], 1
    %22 = vsyncpa %s21, 0
    loop: start=0, step=1, limit=4
    $region2: #{tpu_custom_call.1} parent=1 // loop_pre_header
      _
    $region3: #{tpu_custom_call.1} parent=1 // loop_header
      %s24 = sphi 0, %s28
      %p25 = scmp.ge.s32.totalorder %s24, 4
      %s34 = sphi 0, %s36
      %s37 = sphi 0, %s34
      %s38 = sphi 0, %s37
      %s54 = sphi 0, %s38
      %s58 = sphi 0, %s58
      %s60 = sphi 0, %s58
      %s61 = sphi 0, %s60
      %s75 = sphi 0, %s61
      %s79 = sphi 0, %s79
      %s81 = sphi 0, %s79
      %s82 = sphi 0, %s81
      %s96 = sphi 0, %s82
      %s100 = sphi 0, %s100
      %s102 = sphi 0, %s100
      %s103 = sphi 0, %s102
      %s117 = sphi 0, %s103
      %s121 = sphi 0, %s121
      %s123 = sphi 0, %s121
      %s124 = sphi 0, %s123
      %s138 = sphi 0, %s124
      %s144 = sphi 0, %s146
      %s147 = sphi 0, %s144
      %s148 = sphi 0, %s147
      %s164 = sphi 0, %s148
      %s170 = sphi 0, %s172
      %s173 = sphi 0, %s170
      %s174 = sphi 0, %s173
      %s190 = sphi 0, %s174
    $region4: #{tpu_custom_call.1} parent=1 // loop_header_branch
      %27 = sbr.rel (%p25) target = $region8
    $region5: #{tpu_custom_call.1} parent=1 // loop_body
      %s29 = ssub.s32 %s24, 1
      %s30 = ssub.s32 %s24, 2
      %s31 = sadd.s32 %s24, 1
      %s32 = ssub.s32 %s24, %s31
      %p33 = scmp.eq.s32.totalorder %s32, 0
      %s35 = sadd.s32 %s34, 1
      %s36 = scalar_select %p33, %s34, %s35
      %p39 = pneg %p33
      %p40 = scmp.eq.s32.totalorder %s24, 1
      %p41 = por %p39, %p40
      %p42 = scmp.ne.s32.totalorder %s34, %s37
      %p43 = scmp.eq.s32.totalorder %s24, 0
      %p44 = por %p42, %p43
      %p45 = scmp.ne.s32.totalorder %s34, %s37
      %p46 = scmp.eq.s32.totalorder %s29, 1
      %p47 = por %p45, %p46
      %p48 = scmp.ne.s32.totalorder %s37, %s38
      %p49 = scmp.eq.s32.totalorder %s29, 0
      %p50 = por %p48, %p49
      %p51 = scmp.ne.s32.totalorder %s37, %s38
      %p52 = scmp.eq.s32.totalorder %s30, 1
      %p53 = por %p51, %p52
      %p55 = scmp.ne.s32.totalorder %s38, %s54
      %p56 = scmp.eq.s32.totalorder %s30, 0
      %p57 = por %p55, %p56
      %s59 = sadd.s32 %s58, 1
      %p62 = scmp.eq.s32.totalorder %s24, 1
      %p63 = scmp.ne.s32.totalorder %s58, %s60
      %p64 = scmp.eq.s32.totalorder %s24, 0
      %p65 = por %p63, %p64
      %p66 = scmp.ne.s32.totalorder %s58, %s60
      %p67 = scmp.eq.s32.totalorder %s29, 1
      %p68 = por %p66, %p67
      %p69 = scmp.ne.s32.totalorder %s60, %s61
      %p70 = scmp.eq.s32.totalorder %s29, 0
      %p71 = por %p69, %p70
      %p72 = scmp.ne.s32.totalorder %s60, %s61
      %p73 = scmp.eq.s32.totalorder %s30, 1
      %p74 = por %p72, %p73
      %p76 = scmp.ne.s32.totalorder %s61, %s75
      %p77 = scmp.eq.s32.totalorder %s30, 0
      %p78 = por %p76, %p77
      %s80 = sadd.s32 %s79, 1
      %p83 = scmp.eq.s32.totalorder %s24, 1
      %p84 = scmp.ne.s32.totalorder %s79, %s81
      %p85 = scmp.eq.s32.totalorder %s24, 0
      %p86 = por %p84, %p85
      %p87 = scmp.ne.s32.totalorder %s79, %s81
      %p88 = scmp.eq.s32.totalorder %s29, 1
      %p89 = por %p87, %p88
      %p90 = scmp.ne.s32.totalorder %s81, %s82
      %p91 = scmp.eq.s32.totalorder %s29, 0
      %p92 = por %p90, %p91
      %p93 = scmp.ne.s32.totalorder %s81, %s82
      %p94 = scmp.eq.s32.totalorder %s30, 1
      %p95 = por %p93, %p94
      %p97 = scmp.ne.s32.totalorder %s82, %s96
      %p98 = scmp.eq.s32.totalorder %s30, 0
      %p99 = por %p97, %p98
      %s101 = sadd.s32 %s100, 1
      %p104 = scmp.eq.s32.totalorder %s24, 1
      %p105 = scmp.ne.s32.totalorder %s100, %s102
      %p106 = scmp.eq.s32.totalorder %s24, 0
      %p107 = por %p105, %p106
      %p108 = scmp.ne.s32.totalorder %s100, %s102
      %p109 = scmp.eq.s32.totalorder %s29, 1
      %p110 = por %p108, %p109
      %p111 = scmp.ne.s32.totalorder %s102, %s103
      %p112 = scmp.eq.s32.totalorder %s29, 0
      %p113 = por %p111, %p112
      %p114 = scmp.ne.s32.totalorder %s102, %s103
      %p115 = scmp.eq.s32.totalorder %s30, 1
      %p116 = por %p114, %p115
      %p118 = scmp.ne.s32.totalorder %s103, %s117
      %p119 = scmp.eq.s32.totalorder %s30, 0
      %p120 = por %p118, %p119
      %s122 = sadd.s32 %s121, 1
      %p125 = scmp.eq.s32.totalorder %s24, 1
      %p126 = scmp.ne.s32.totalorder %s121, %s123
      %p127 = scmp.eq.s32.totalorder %s24, 0
      %p128 = por %p126, %p127
      %p129 = scmp.ne.s32.totalorder %s121, %s123
      %p130 = scmp.eq.s32.totalorder %s29, 1
      %p131 = por %p129, %p130
      %p132 = scmp.ne.s32.totalorder %s123, %s124
      %p133 = scmp.eq.s32.totalorder %s29, 0
      %p134 = por %p132, %p133
      %p135 = scmp.ne.s32.totalorder %s123, %s124
      %p136 = scmp.eq.s32.totalorder %s30, 1
      %p137 = por %p135, %p136
      %p139 = scmp.ne.s32.totalorder %s124, %s138
      %p140 = scmp.eq.s32.totalorder %s30, 0
      %p141 = por %p139, %p140
      %s142 = ssub.s32 %s24, %s31
      %p143 = scmp.eq.s32.totalorder %s142, 0
      %s145 = sadd.s32 %s144, 1
      %s146 = scalar_select %p143, %s144, %s145
      %p149 = pneg %p143
      %p150 = scmp.eq.s32.totalorder %s24, 1
      %p151 = por %p149, %p150
      %p152 = scmp.ne.s32.totalorder %s144, %s147
      %p153 = scmp.eq.s32.totalorder %s24, 0
      %p154 = por %p152, %p153
      %p155 = scmp.ne.s32.totalorder %s144, %s147
      %p156 = scmp.eq.s32.totalorder %s29, 1
      %p157 = por %p155, %p156
      %p158 = scmp.ne.s32.totalorder %s147, %s148
      %p159 = scmp.eq.s32.totalorder %s29, 0
      %p160 = por %p158, %p159
      %p161 = scmp.ne.s32.totalorder %s147, %s148
      %p162 = scmp.eq.s32.totalorder %s30, 1
      %p163 = por %p161, %p162
      %p165 = scmp.ne.s32.totalorder %s148, %s164
      %p166 = scmp.eq.s32.totalorder %s30, 0
      %p167 = por %p165, %p166
      %s168 = ssub.s32 %s24, %s31
      %p169 = scmp.eq.s32.totalorder %s168, 0
      %s171 = sadd.s32 %s170, 1
      %s172 = scalar_select %p169, %s170, %s171
      %p175 = pneg %p169
      %p176 = scmp.eq.s32.totalorder %s24, 1
      %p177 = por %p175, %p176
      %p178 = scmp.ne.s32.totalorder %s170, %s173
      %p179 = scmp.eq.s32.totalorder %s24, 0
      %p180 = por %p178, %p179
      %p181 = scmp.ne.s32.totalorder %s170, %s173
      %p182 = scmp.eq.s32.totalorder %s29, 1
      %p183 = por %p181, %p182
      %p184 = scmp.ne.s32.totalorder %s173, %s174
      %p185 = scmp.eq.s32.totalorder %s29, 0
      %p186 = por %p184, %p185
      %p187 = scmp.ne.s32.totalorder %s173, %s174
      %p188 = scmp.eq.s32.totalorder %s30, 1
      %p189 = por %p187, %p188
      %p191 = scmp.ne.s32.totalorder %s174, %s190
      %p192 = scmp.eq.s32.totalorder %s30, 0
      %p193 = por %p191, %p192
      %p194 = scmp.le.s32.totalorder 1, %s24
      %p195 = scmp.lt.s32.totalorder %s24, 3
      %p196 = pnand %p194, %p195
      %p197 = pneg %p196
      // Predicated region
      $region9: #{tpu_custom_call.1} parent=5 // pred_check
        _
      $region10: #{tpu_custom_call.1} parent=5 // pred_check_branch
        %199 = sbr.rel (%p196) target = $region12
      $region11: #{tpu_custom_call.1} parent=5 // pred_region
        %s200 = ssub.s32 %s24, 1
        // Predicated region
        $region13: #{tpu_custom_call.1} parent=11 // pred_check
          %p201 = pneg %p71
        $region14: #{tpu_custom_call.1} parent=11 // pred_check_branch
          %203 = sbr.rel (%p201) target = $region16
        $region15: #{tpu_custom_call.1} parent=11 // pred_region
          %s205 = ssub.s32 256, 256
          %206 = vsyncadd [#allocation6], %s205
          %s207 = sshll.u32 [#allocation5], 4
          %s208 = int_to_ptr.vmem [resolvable:$true] %s207
          %213 = dma.hbm_to_vmem [thread:$0]  %s1, 256, %s208, [#allocation6], 64, 64, 4
        $region16: #{tpu_custom_call.1} parent=11 // pred_fallthru
          _
        // Predicated region
        $region17: #{tpu_custom_call.1} parent=11 // pred_check
          %p214 = pneg %p92
        $region18: #{tpu_custom_call.1} parent=11 // pred_check_branch
          %216 = sbr.rel (%p214) target = $region20
        $region19: #{tpu_custom_call.1} parent=11 // pred_region
          %s218 = ssub.s32 16, 16
          %219 = vsyncadd [#allocation6], %s218
          %s221 = sshll.u32 [#allocation7], 4
          %s222 = int_to_ptr.vmem [resolvable:$true] %s221
          %224 = dma.hbm_to_vmem [thread:$0]  %s2, 16, %s222, [#allocation6]
        $region20: #{tpu_custom_call.1} parent=11 // pred_fallthru
          _
        // Predicated region
        $region21: #{tpu_custom_call.1} parent=11 // pred_check
          %p225 = pneg %p113
        $region22: #{tpu_custom_call.1} parent=11 // pred_check_branch
          %227 = sbr.rel (%p225) target = $region24
        $region23: #{tpu_custom_call.1} parent=11 // pred_region
          %s229 = ssub.s32 7168, 7168
          %230 = vsyncadd [#allocation9], %s229
          %s231 = sshll.u32 [#allocation8], 4
          %s232 = int_to_ptr.vmem [resolvable:$true] %s231
          %237 = dma.hbm_to_vmem [thread:$0]  %s3, 7168, %s232, [#allocation9], 448, 448, 28
        $region24: #{tpu_custom_call.1} parent=11 // pred_fallthru
          _
        // Predicated region
        $region25: #{tpu_custom_call.1} parent=11 // pred_check
          %p238 = pneg %p134
        $region26: #{tpu_custom_call.1} parent=11 // pred_check_branch
          %240 = sbr.rel (%p238) target = $region28
        $region27: #{tpu_custom_call.1} parent=11 // pred_region
          _
        $region28: #{tpu_custom_call.1} parent=11 // pred_fallthru
          _
      $region12: #{tpu_custom_call.1} parent=5 // pred_fallthru
        _
      %p241 = scmp.lt.s32.totalorder %s24, 2
      // Predicated region
      $region29: #{tpu_custom_call.1} parent=5 // pred_check
        %p242 = pneg %p241
      $region30: #{tpu_custom_call.1} parent=5 // pred_check_branch
        %244 = sbr.rel (%p242) target = $region32
      $region31: #{tpu_custom_call.1} parent=5 // pred_region
        // Predicated region
        $region33: #{tpu_custom_call.1} parent=31 // pred_check
          %p245 = pneg %p44
        $region34: #{tpu_custom_call.1} parent=31 // pred_check_branch
          %247 = sbr.rel (%p245) target = $region36
        $region35: #{tpu_custom_call.1} parent=31 // pred_region
          %s248 = sand.u32 %s34, 1
          %s249 = scalar_lea.sflag [#allocation3], %s248
          %s250 = sand.u32 %s34, 1
          %s251 = smul.addr %s250, 8
          %s252 = scalar_lea.vmem [#allocation2], %s251
          %s254 = ssub.s32 128, 128
          %255 = vsyncadd %s249, %s254
          %s256 = smul.addr %s24, 128
          %s257 = scalar_lea.hbm %s0, %s256
          %s259 = sshll.u32 %s252, 4
          %s260 = int_to_ptr.vmem [resolvable:$true] %s259
          %262 = dma.hbm_to_vmem [thread:$0]  %s257, 128, %s260, %s249
        $region36: #{tpu_custom_call.1} parent=31 // pred_fallthru
          _
      $region32: #{tpu_custom_call.1} parent=5 // pred_fallthru
        _
      %p263 = scmp.le.s32.totalorder 1, %s24
      %p264 = scmp.lt.s32.totalorder %s24, 3
      %p265 = pnand %p263, %p264
      %p266 = pneg %p265
      // Predicated region
      $region37: #{tpu_custom_call.1} parent=5 // pred_check
        _
      $region38: #{tpu_custom_call.1} parent=5 // pred_check_branch
        %268 = sbr.rel (%p265) target = $region40
      $region39: #{tpu_custom_call.1} parent=5 // pred_region
        %s269 = ssub.s32 %s24, 1
        %s270 = sand.u32 %s37, 1
        %s271 = scalar_lea.sflag [#allocation3], %s270
        %s272 = sand.u32 %s37, 1
        %s273 = smul.addr %s272, 8
        %s274 = scalar_lea.vmem [#allocation2], %s273
        // Predicated region
        $region41: #{tpu_custom_call.1} parent=39 // pred_check
          %p275 = pneg %p50
        $region42: #{tpu_custom_call.1} parent=39 // pred_check_branch
          %277 = sbr.rel (%p275) target = $region44
        $region43: #{tpu_custom_call.1} parent=39 // pred_region
          %278 = dma.done %s271, 128
        $region44: #{tpu_custom_call.1} parent=39 // pred_fallthru
          _
        // Predicated region
        $region45: #{tpu_custom_call.1} parent=39 // pred_check
          %p279 = pneg %p71
        $region46: #{tpu_custom_call.1} parent=39 // pred_check_branch
          %281 = sbr.rel (%p279) target = $region48
        $region47: #{tpu_custom_call.1} parent=39 // pred_region
          %282 = dma.done [#allocation6], 256
        $region48: #{tpu_custom_call.1} parent=39 // pred_fallthru
          _
        // Predicated region
        $region49: #{tpu_custom_call.1} parent=39 // pred_check
          %p283 = pneg %p92
        $region50: #{tpu_custom_call.1} parent=39 // pred_check_branch
          %285 = sbr.rel (%p283) target = $region52
        $region51: #{tpu_custom_call.1} parent=39 // pred_region
          %286 = dma.done [#allocation6], 16
        $region52: #{tpu_custom_call.1} parent=39 // pred_fallthru
          _
        // Predicated region
        $region53: #{tpu_custom_call.1} parent=39 // pred_check
          %p287 = pneg %p113
        $region54: #{tpu_custom_call.1} parent=39 // pred_check_branch
          %289 = sbr.rel (%p287) target = $region56
        $region55: #{tpu_custom_call.1} parent=39 // pred_region
          %290 = dma.done [#allocation9], 7168
        $region56: #{tpu_custom_call.1} parent=39 // pred_fallthru
          _
        %s291 = sand.u32 %s37, 1
        %s292 = scalar_lea.sflag [#allocation3], %s291
        %s293 = sand.u32 %s37, 1
        %s294 = smul.addr %s293, 8
        %s295 = scalar_lea.vmem [#allocation2], %s294
        %p296 = pneg %p50
        %p297 = pneg %p47
        %p298 = pneg %p71
        %p299 = pneg %p68
        %p300 = pneg %p92
        %p301 = pneg %p89
        %p302 = pneg %p113
        %p303 = pneg %p110
        %p304 = pneg %p134
        %p305 = pneg %p131
        %p306 = pneg %p160
        %p307 = pneg %p157
        %s308 = sand.u32 %s147, 1
        %s309 = scalar_lea.sflag [#allocation4], %s308
        %s310 = sand.u32 %s147, 1
        %s311 = smul.addr %s310, 56
        %s312 = scalar_lea.vmem [#allocation10], %s311
        %p313 = pneg %p186
        %p314 = pneg %p183
        %s315 = sand.u32 %s173, 1
        %s316 = scalar_lea.sflag [#allocation12], %s315
        %s317 = sand.u32 %s173, 1
        %s318 = smul.addr %s317, 56
        %s319 = scalar_lea.vmem [#allocation11], %s318
        %v321 = vld [vmem:[%s274] sm:$0xff]
        %v322 = vpack.c.bf16 %v321, %v321
        %v323 = vld [vmem:[#allocation5] sm:$0xf]
        %v324 = vld [vmem:[#allocation5 + $0x4] sm:$0xf]
        %v325 = vld [vmem:[#allocation5 + $0x8] sm:$0xf]
        %v326 = vld [vmem:[#allocation5 + $0xc] sm:$0xf]
        %v327 = vld [vmem:[#allocation7] sm:$0x1]
        %v329 = vlaneseq
        %v330 = vshrl.u32 %v329, 7
        %v331 = vsub.s32 0, %v330
        %v332 = vrot.slane %v327, %v331
        %v338 = vunpack.c.l.b16 %v323
        %v339 = vunpack.c.l.b16 %v324
        %v340 = vunpack.c.l.b16 %v325
        %v341 = vunpack.c.l.b16 %v326
        %v342 = vpack.c.b16 %v339, %v338
        %v343 = vpack.c.b16 %v341, %v340
        %vm346 = vcmask 261120
        %v348 = vsel %vm346, %v322, 0
        %350 = vmatprep.subr.bf16.mxu0 0
        %351 = vmatpush1.bf16.msra.mxu0 0
        %352 = vmatprep.subr.bf16.mxu0 0
        %353 = vmatpush1.bf16.msra.mxu0 0
        %354 = vmatprep.subr.bf16.mxu0 0
        %355 = vmatpush1.bf16.msra.mxu0 0
        %356 = vmatprep.subr.bf16.mxu0 0
        %357 = vmatpush1.bf16.msra.mxu0 0
        %358 = vmatprep.subr.bf16.mxu0 0
        %359 = vmatpush1.bf16.msra.mxu0 0
        %360 = vmatprep.subr.bf16.mxu0 0
        %361 = vmatpush1.bf16.msra.mxu0 0
        %362 = vmatprep.subr.bf16.mxu0 0
        %363 = vmatpush1.bf16.msra.mxu0 %v343
        %364 = vmatprep.subr.bf16.mxu0 0
        %365 = vmatpush1.bf16.msra.mxu0 %v342
        %366 = vmatprep.subr.bf16.mxu0 0
        %367 = vmatpush2.bf16.msra.mxu0 0
        %368 = vmatprep.subr.bf16.mxu0 0
        %369 = vmatpush2.bf16.msra.mxu0 0
        %370 = vmatprep.subr.bf16.mxu0 0
        %371 = vmatpush2.bf16.msra.mxu0 0
        %372 = vmatprep.subr.bf16.mxu0 0
        %373 = vmatpush2.bf16.msra.mxu0 0
        %374 = vmatprep.subr.bf16.mxu0 0
        %375 = vmatpush2.bf16.msra.mxu0 0
        %376 = vmatprep.subr.bf16.mxu0 0
        %377 = vmatpush2.bf16.msra.mxu0 0
        %378 = vmatprep.subr.bf16.mxu0 0
        %379 = vmatpush2.bf16.msra.mxu0 0
        %380 = vmatprep.subr.bf16.mxu0 0
        %381 = vmatpush2.bf16.msra.mxu0 0
        %382 = vmatprep.mubr.bf16.mxu0 0
        %383 = vmatmul.mubr.bf16.gmra.mxu0 %v348
        %v384 = vpop.f32.mrf.mxu0
        %v385 = vadd.f32 %v332, %v384
        %v386 = vpop.f32.mrf.mxu0
        %v387 = vpop.f32.mrf.mxu0
        %v388 = vpop.f32.mrf.mxu0
        %389 = vdwg.mxu0
        %v390 = vmax.f32 %v385, 0.0
        %v391 = vpack.c.bf16 %v390, %v390
        %v392 = vld [vmem:[#allocation8] sm:$0xff]
        %v393 = vld [vmem:[#allocation8 + $0x8] sm:$0xff]
        %v394 = vld [vmem:[#allocation8 + $0x10] sm:$0xff]
        %v395 = vld [vmem:[#allocation8 + $0x18] sm:$0xf]
        %v396 = vld [vmem:[#allocation8 + $0x1c] sm:$0xff]
        %v397 = vld [vmem:[#allocation8 + $0x24] sm:$0xff]
        %v398 = vld [vmem:[#allocation8 + $0x2c] sm:$0xff]
        %v399 = vld [vmem:[#allocation8 + $0x34] sm:$0xf]
        %v400 = vld [vmem:[#allocation8 + $0x38] sm:$0xff]
        %v401 = vld [vmem:[#allocation8 + $0x40] sm:$0xff]
        %v402 = vld [vmem:[#allocation8 + $0x48] sm:$0xff]
        %v403 = vld [vmem:[#allocation8 + $0x50] sm:$0xf]
        %v404 = vld [vmem:[#allocation8 + $0x54] sm:$0xff]
        %v405 = vld [vmem:[#allocation8 + $0x5c] sm:$0xff]
        %v406 = vld [vmem:[#allocation8 + $0x64] sm:$0xff]
        %v407 = vld [vmem:[#allocation8 + $0x6c] sm:$0xf]
        %v408 = vld [vmem:[#allocation8 + $0x70] sm:$0xff]
        %v409 = vld [vmem:[#allocation8 + $0x78] sm:$0xff]
        %v410 = vld [vmem:[#allocation8 + $0x80] sm:$0xff]
        %v411 = vld [vmem:[#allocation8 + $0x88] sm:$0xf]
        %v412 = vld [vmem:[#allocation8 + $0x8c] sm:$0xff]
        %v413 = vld [vmem:[#allocation8 + $0x94] sm:$0xff]
        %v414 = vld [vmem:[#allocation8 + $0x9c] sm:$0xff]
        %v415 = vld [vmem:[#allocation8 + $0xa4] sm:$0xf]
        %v416 = vld [vmem:[#allocation8 + $0xa8] sm:$0xff]
        %v417 = vld [vmem:[#allocation8 + $0xb0] sm:$0xff]
        %v418 = vld [vmem:[#allocation8 + $0xb8] sm:$0xff]
        %v419 = vld [vmem:[#allocation8 + $0xc0] sm:$0xf]
        %v420 = vld [vmem:[#allocation8 + $0xc4] sm:$0xff]
        %v421 = vld [vmem:[#allocation8 + $0xcc] sm:$0xff]
        %v422 = vld [vmem:[#allocation8 + $0xd4] sm:$0xff]
        %v423 = vld [vmem:[#allocation8 + $0xdc] sm:$0xf]
        %v424 = vld [vmem:[#allocation8 + $0xe0] sm:$0xff]
        %v425 = vld [vmem:[#allocation8 + $0xe8] sm:$0xff]
        %v426 = vld [vmem:[#allocation8 + $0xf0] sm:$0xff]
        %v427 = vld [vmem:[#allocation8 + $0xf8] sm:$0xf]
        %v428 = vld [vmem:[#allocation8 + $0xfc] sm:$0xff]
        %v429 = vld [vmem:[#allocation8 + $0x104] sm:$0xff]
        %v430 = vld [vmem:[#allocation8 + $0x10c] sm:$0xff]
        %v431 = vld [vmem:[#allocation8 + $0x114] sm:$0xf]
        %v432 = vld [vmem:[#allocation8 + $0x118] sm:$0xff]
        %v433 = vld [vmem:[#allocation8 + $0x120] sm:$0xff]
        %v434 = vld [vmem:[#allocation8 + $0x128] sm:$0xff]
        %v435 = vld [vmem:[#allocation8 + $0x130] sm:$0xf]
        %v436 = vld [vmem:[#allocation8 + $0x134] sm:$0xff]
        %v437 = vld [vmem:[#allocation8 + $0x13c] sm:$0xff]
        %v438 = vld [vmem:[#allocation8 + $0x144] sm:$0xff]
        %v439 = vld [vmem:[#allocation8 + $0x14c] sm:$0xf]
        %v440 = vld [vmem:[#allocation8 + $0x150] sm:$0xff]
        %v441 = vld [vmem:[#allocation8 + $0x158] sm:$0xff]
        %v442 = vld [vmem:[#allocation8 + $0x160] sm:$0xff]
        %v443 = vld [vmem:[#allocation8 + $0x168] sm:$0xf]
        %v444 = vld [vmem:[#allocation8 + $0x16c] sm:$0xff]
        %v445 = vld [vmem:[#allocation8 + $0x174] sm:$0xff]
        %v446 = vld [vmem:[#allocation8 + $0x17c] sm:$0xff]
        %v447 = vld [vmem:[#allocation8 + $0x184] sm:$0xf]
        %v448 = vld [vmem:[#allocation8 + $0x188] sm:$0xff]
        %v449 = vld [vmem:[#allocation8 + $0x190] sm:$0xff]
        %v450 = vld [vmem:[#allocation8 + $0x198] sm:$0xff]
        %v451 = vld [vmem:[#allocation8 + $0x1a0] sm:$0xf]
        %v452 = vld [vmem:[#allocation8 + $0x1a4] sm:$0xff]
        %v453 = vld [vmem:[#allocation8 + $0x1ac] sm:$0xff]
        %v454 = vld [vmem:[#allocation8 + $0x1b4] sm:$0xff]
        %v455 = vld [vmem:[#allocation8 + $0x1bc] sm:$0xf]
        %v456 = vld [vmem:[%s4] sm:$0xff]
        %v458 = vlaneseq
        %v459 = vshrl.u32 %v458, 7
        %v460 = vsub.s32 0, %v459
        %v461 = vrot.slane %v456, %v460
        %v462 = vlaneseq
        %v463 = vshrl.u32 %v462, 7
        %v464 = vsub.s32 1, %v463
        %v465 = vrot.slane %v456, %v464
        %v466 = vlaneseq
        %v467 = vshrl.u32 %v466, 7
        %v468 = vsub.s32 2, %v467
        %v469 = vrot.slane %v456, %v468
        %v470 = vlaneseq
        %v471 = vshrl.u32 %v470, 7
        %v472 = vsub.s32 3, %v471
        %v473 = vrot.slane %v456, %v472
        %v474 = vlaneseq
        %v475 = vshrl.u32 %v474, 7
        %v476 = vsub.s32 4, %v475
        %v477 = vrot.slane %v456, %v476
        %v478 = vlaneseq
        %v479 = vshrl.u32 %v478, 7
        %v480 = vsub.s32 5, %v479
        %v481 = vrot.slane %v456, %v480
        %v482 = vlaneseq
        %v483 = vshrl.u32 %v482, 7
        %v484 = vsub.s32 6, %v483
        %v485 = vrot.slane %v456, %v484
        %v557 = vunpack.c.l.b16 %v392
        %v558 = vunpack.c.h.b16 %v392
        %v559 = vunpack.c.l.b16 %v393
        %v560 = vunpack.c.h.b16 %v393
        %v561 = vunpack.c.l.b16 %v394
        %v562 = vunpack.c.h.b16 %v394
        %v563 = vunpack.c.l.b16 %v395
        %v564 = vunpack.c.l.b16 %v396
        %v565 = vunpack.c.h.b16 %v396
        %v566 = vunpack.c.l.b16 %v397
        %v567 = vunpack.c.h.b16 %v397
        %v568 = vunpack.c.l.b16 %v398
        %v569 = vunpack.c.h.b16 %v398
        %v570 = vunpack.c.l.b16 %v399
        %v571 = vunpack.c.l.b16 %v400
        %v572 = vunpack.c.h.b16 %v400
        %v573 = vunpack.c.l.b16 %v401
        %v574 = vunpack.c.h.b16 %v401
        %v575 = vunpack.c.l.b16 %v402
        %v576 = vunpack.c.h.b16 %v402
        %v577 = vunpack.c.l.b16 %v403
        %v578 = vunpack.c.l.b16 %v404
        %v579 = vunpack.c.h.b16 %v404
        %v580 = vunpack.c.l.b16 %v405
        %v581 = vunpack.c.h.b16 %v405
        %v582 = vunpack.c.l.b16 %v406
        %v583 = vunpack.c.h.b16 %v406
        %v584 = vunpack.c.l.b16 %v407
        %v585 = vunpack.c.l.b16 %v408
        %v586 = vunpack.c.h.b16 %v408
        %v587 = vunpack.c.l.b16 %v409
        %v588 = vunpack.c.h.b16 %v409
        %v589 = vunpack.c.l.b16 %v410
        %v590 = vunpack.c.h.b16 %v410
        %v591 = vunpack.c.l.b16 %v411
        %v592 = vunpack.c.l.b16 %v412
        %v593 = vunpack.c.h.b16 %v412
        %v594 = vunpack.c.l.b16 %v413
        %v595 = vunpack.c.h.b16 %v413
        %v596 = vunpack.c.l.b16 %v414
        %v597 = vunpack.c.h.b16 %v414
        %v598 = vunpack.c.l.b16 %v415
        %v599 = vunpack.c.l.b16 %v416
        %v600 = vunpack.c.h.b16 %v416
        %v601 = vunpack.c.l.b16 %v417
        %v602 = vunpack.c.h.b16 %v417
        %v603 = vunpack.c.l.b16 %v418
        %v604 = vunpack.c.h.b16 %v418
        %v605 = vunpack.c.l.b16 %v419
        %v606 = vunpack.c.l.b16 %v420
        %v607 = vunpack.c.h.b16 %v420
        %v608 = vunpack.c.l.b16 %v421
        %v609 = vunpack.c.h.b16 %v421
        %v610 = vunpack.c.l.b16 %v422
        %v611 = vunpack.c.h.b16 %v422
        %v612 = vunpack.c.l.b16 %v423
        %v613 = vunpack.c.l.b16 %v424
        %v614 = vunpack.c.h.b16 %v424
        %v615 = vunpack.c.l.b16 %v425
        %v616 = vunpack.c.h.b16 %v425
        %v617 = vunpack.c.l.b16 %v426
        %v618 = vunpack.c.h.b16 %v426
        %v619 = vunpack.c.l.b16 %v427
        %v620 = vunpack.c.l.b16 %v428
        %v621 = vunpack.c.h.b16 %v428
        %v622 = vunpack.c.l.b16 %v429
        %v623 = vunpack.c.h.b16 %v429
        %v624 = vunpack.c.l.b16 %v430
        %v625 = vunpack.c.h.b16 %v430
        %v626 = vunpack.c.l.b16 %v431
        %v627 = vunpack.c.l.b16 %v432
        %v628 = vunpack.c.h.b16 %v432
        %v629 = vunpack.c.l.b16 %v433
        %v630 = vunpack.c.h.b16 %v433
        %v631 = vunpack.c.l.b16 %v434
        %v632 = vunpack.c.h.b16 %v434
        %v633 = vunpack.c.l.b16 %v435
        %v634 = vunpack.c.l.b16 %v436
        %v635 = vunpack.c.h.b16 %v436
        %v636 = vunpack.c.l.b16 %v437
        %v637 = vunpack.c.h.b16 %v437
        %v638 = vunpack.c.l.b16 %v438
        %v639 = vunpack.c.h.b16 %v438
        %v640 = vunpack.c.l.b16 %v439
        %v641 = vunpack.c.l.b16 %v440
        %v642 = vunpack.c.h.b16 %v440
        %v643 = vunpack.c.l.b16 %v441
        %v644 = vunpack.c.h.b16 %v441
        %v645 = vunpack.c.l.b16 %v442
        %v646 = vunpack.c.h.b16 %v442
        %v647 = vunpack.c.l.b16 %v443
        %v648 = vunpack.c.l.b16 %v444
        %v649 = vunpack.c.h.b16 %v444
        %v650 = vunpack.c.l.b16 %v445
        %v651 = vunpack.c.h.b16 %v445
        %v652 = vunpack.c.l.b16 %v446
        %v653 = vunpack.c.h.b16 %v446
        %v654 = vunpack.c.l.b16 %v447
        %v655 = vunpack.c.l.b16 %v448
        %v656 = vunpack.c.h.b16 %v448
        %v657 = vunpack.c.l.b16 %v449
        %v658 = vunpack.c.h.b16 %v449
        %v659 = vunpack.c.l.b16 %v450
        %v660 = vunpack.c.h.b16 %v450
        %v661 = vunpack.c.l.b16 %v451
        %v662 = vunpack.c.l.b16 %v452
        %v663 = vunpack.c.h.b16 %v452
        %v664 = vunpack.c.l.b16 %v453
        %v665 = vunpack.c.h.b16 %v453
        %v666 = vunpack.c.l.b16 %v454
        %v667 = vunpack.c.h.b16 %v454
        %v668 = vunpack.c.l.b16 %v455
        %v669 = vpack.c.b16 %v564, %v557
        %v670 = vpack.c.b16 %v565, %v558
        %v671 = vpack.c.b16 %v566, %v559
        %v672 = vpack.c.b16 %v567, %v560
        %v673 = vpack.c.b16 %v568, %v561
        %v674 = vpack.c.b16 %v569, %v562
        %v675 = vpack.c.b16 %v570, %v563
        %v676 = vpack.c.b16 %v578, %v571
        %v677 = vpack.c.b16 %v579, %v572
        %v678 = vpack.c.b16 %v580, %v573
        %v679 = vpack.c.b16 %v581, %v574
        %v680 = vpack.c.b16 %v582, %v575
        %v681 = vpack.c.b16 %v583, %v576
        %v682 = vpack.c.b16 %v584, %v577
        %v683 = vpack.c.b16 %v592, %v585
        %v684 = vpack.c.b16 %v593, %v586
        %v685 = vpack.c.b16 %v594, %v587
        %v686 = vpack.c.b16 %v595, %v588
        %v687 = vpack.c.b16 %v596, %v589
        %v688 = vpack.c.b16 %v597, %v590
        %v689 = vpack.c.b16 %v598, %v591
        %v690 = vpack.c.b16 %v606, %v599
        %v691 = vpack.c.b16 %v607, %v600
        %v692 = vpack.c.b16 %v608, %v601
        %v693 = vpack.c.b16 %v609, %v602
        %v694 = vpack.c.b16 %v610, %v603
        %v695 = vpack.c.b16 %v611, %v604
        %v696 = vpack.c.b16 %v612, %v605
        %v697 = vpack.c.b16 %v620, %v613
        %v698 = vpack.c.b16 %v621, %v614
        %v699 = vpack.c.b16 %v622, %v615
        %v700 = vpack.c.b16 %v623, %v616
        %v701 = vpack.c.b16 %v624, %v617
        %v702 = vpack.c.b16 %v625, %v618
        %v703 = vpack.c.b16 %v626, %v619
        %v704 = vpack.c.b16 %v634, %v627
        %v705 = vpack.c.b16 %v635, %v628
        %v706 = vpack.c.b16 %v636, %v629
        %v707 = vpack.c.b16 %v637, %v630
        %v708 = vpack.c.b16 %v638, %v631
        %v709 = vpack.c.b16 %v639, %v632
        %v710 = vpack.c.b16 %v640, %v633
        %v711 = vpack.c.b16 %v648, %v641
        %v712 = vpack.c.b16 %v649, %v642
        %v713 = vpack.c.b16 %v650, %v643
        %v714 = vpack.c.b16 %v651, %v644
        %v715 = vpack.c.b16 %v652, %v645
        %v716 = vpack.c.b16 %v653, %v646
        %v717 = vpack.c.b16 %v654, %v647
        %v718 = vpack.c.b16 %v662, %v655
        %v719 = vpack.c.b16 %v663, %v656
        %v720 = vpack.c.b16 %v664, %v657
        %v721 = vpack.c.b16 %v665, %v658
        %v722 = vpack.c.b16 %v666, %v659
        %v723 = vpack.c.b16 %v667, %v660
        %v724 = vpack.c.b16 %v668, %v661
        %781 = vmatprep.subr.bf16.mxu0 %v719
        %782 = vmatpush1.bf16.msra.mxu0 %v718
        %783 = vmatprep.subr.bf16.mxu0 %v712
        %784 = vmatpush1.bf16.msra.mxu0 %v711
        %785 = vmatprep.subr.bf16.mxu0 %v705
        %786 = vmatpush1.bf16.msra.mxu0 %v704
        %787 = vmatprep.subr.bf16.mxu0 %v698
        %788 = vmatpush1.bf16.msra.mxu0 %v697
        %789 = vmatprep.subr.bf16.mxu0 %v691
        %790 = vmatpush1.bf16.msra.mxu0 %v690
        %791 = vmatprep.subr.bf16.mxu0 %v684
        %792 = vmatpush1.bf16.msra.mxu0 %v683
        %793 = vmatprep.subr.bf16.mxu0 %v677
        %794 = vmatpush1.bf16.msra.mxu0 %v676
        %795 = vmatprep.subr.bf16.mxu0 %v670
        %796 = vmatpush1.bf16.msra.mxu0 %v669
        %797 = vmatprep.subr.bf16.mxu0 0
        %798 = vmatpush2.bf16.msra.mxu0 0
        %799 = vmatprep.subr.bf16.mxu0 0
        %800 = vmatpush2.bf16.msra.mxu0 0
        %801 = vmatprep.subr.bf16.mxu0 0
        %802 = vmatpush2.bf16.msra.mxu0 0
        %803 = vmatprep.subr.bf16.mxu0 0
        %804 = vmatpush2.bf16.msra.mxu0 0
        %805 = vmatprep.subr.bf16.mxu0 0
        %806 = vmatpush2.bf16.msra.mxu0 0
        %807 = vmatprep.subr.bf16.mxu0 0
        %808 = vmatpush2.bf16.msra.mxu0 0
        %809 = vmatprep.subr.bf16.mxu0 0
        %810 = vmatpush2.bf16.msra.mxu0 0
        %811 = vmatprep.subr.bf16.mxu0 0
        %812 = vmatpush2.bf16.msra.mxu0 0
        %813 = vmatprep.mubr.bf16.mxu0 0
        %814 = vmatmul.mubr.bf16.gmra.mxu0 %v391
        %v815 = vpop.f32.mrf.mxu0
        %v816 = vadd.f32 %v461, %v815
        %v817 = vpop.f32.mrf.mxu0
        %v818 = vadd.f32 %v465, %v817
        %v819 = vpop.f32.mrf.mxu0
        %v820 = vpop.f32.mrf.mxu0
        %821 = vdwg.mxu0
        %822 = vmatprep.subr.bf16.mxu0 %v721
        %823 = vmatpush1.bf16.msra.mxu0 %v720
        %824 = vmatprep.subr.bf16.mxu0 %v714
        %825 = vmatpush1.bf16.msra.mxu0 %v713
        %826 = vmatprep.subr.bf16.mxu0 %v707
        %827 = vmatpush1.bf16.msra.mxu0 %v706
        %828 = vmatprep.subr.bf16.mxu0 %v700
        %829 = vmatpush1.bf16.msra.mxu0 %v699
        %830 = vmatprep.subr.bf16.mxu0 %v693
        %831 = vmatpush1.bf16.msra.mxu0 %v692
        %832 = vmatprep.subr.bf16.mxu0 %v686
        %833 = vmatpush1.bf16.msra.mxu0 %v685
        %834 = vmatprep.subr.bf16.mxu0 %v679
        %835 = vmatpush1.bf16.msra.mxu0 %v678
        %836 = vmatprep.subr.bf16.mxu0 %v672
        %837 = vmatpush1.bf16.msra.mxu0 %v671
        %838 = vmatprep.subr.bf16.mxu0 0
        %839 = vmatpush2.bf16.msra.mxu0 0
        %840 = vmatprep.subr.bf16.mxu0 0
        %841 = vmatpush2.bf16.msra.mxu0 0
        %842 = vmatprep.subr.bf16.mxu0 0
        %843 = vmatpush2.bf16.msra.mxu0 0
        %844 = vmatprep.subr.bf16.mxu0 0
        %845 = vmatpush2.bf16.msra.mxu0 0
        %846 = vmatprep.subr.bf16.mxu0 0
        %847 = vmatpush2.bf16.msra.mxu0 0
        %848 = vmatprep.subr.bf16.mxu0 0
        %849 = vmatpush2.bf16.msra.mxu0 0
        %850 = vmatprep.subr.bf16.mxu0 0
        %851 = vmatpush2.bf16.msra.mxu0 0
        %852 = vmatprep.subr.bf16.mxu0 0
        %853 = vmatpush2.bf16.msra.mxu0 0
        %854 = vmatprep.mubr.bf16.mxu0 0
        %855 = vmatmul.mubr.bf16.gmra.mxu0 %v391
        %v856 = vpop.f32.mrf.mxu0
        %v857 = vadd.f32 %v469, %v856
        %v858 = vpop.f32.mrf.mxu0
        %v859 = vadd.f32 %v473, %v858
        %v860 = vpop.f32.mrf.mxu0
        %v861 = vpop.f32.mrf.mxu0
        %862 = vdwg.mxu0
        %863 = vmatprep.subr.bf16.mxu0 %v723
        %864 = vmatpush1.bf16.msra.mxu0 %v722
        %865 = vmatprep.subr.bf16.mxu0 %v716
        %866 = vmatpush1.bf16.msra.mxu0 %v715
        %867 = vmatprep.subr.bf16.mxu0 %v709
        %868 = vmatpush1.bf16.msra.mxu0 %v708
        %869 = vmatprep.subr.bf16.mxu0 %v702
        %870 = vmatpush1.bf16.msra.mxu0 %v701
        %871 = vmatprep.subr.bf16.mxu0 %v695
        %872 = vmatpush1.bf16.msra.mxu0 %v694
        %873 = vmatprep.subr.bf16.mxu0 %v688
        %874 = vmatpush1.bf16.msra.mxu0 %v687
        %875 = vmatprep.subr.bf16.mxu0 %v681
        %876 = vmatpush1.bf16.msra.mxu0 %v680
        %877 = vmatprep.subr.bf16.mxu0 %v674
        %878 = vmatpush1.bf16.msra.mxu0 %v673
        %879 = vmatprep.subr.bf16.mxu0 0
        %880 = vmatpush2.bf16.msra.mxu0 0
        %881 = vmatprep.subr.bf16.mxu0 0
        %882 = vmatpush2.bf16.msra.mxu0 0
        %883 = vmatprep.subr.bf16.mxu0 0
        %884 = vmatpush2.bf16.msra.mxu0 0
        %885 = vmatprep.subr.bf16.mxu0 0
        %886 = vmatpush2.bf16.msra.mxu0 0
        %887 = vmatprep.subr.bf16.mxu0 0
        %888 = vmatpush2.bf16.msra.mxu0 0
        %889 = vmatprep.subr.bf16.mxu0 0
        %890 = vmatpush2.bf16.msra.mxu0 0
        %891 = vmatprep.subr.bf16.mxu0 0
        %892 = vmatpush2.bf16.msra.mxu0 0
        %893 = vmatprep.subr.bf16.mxu0 0
        %894 = vmatpush2.bf16.msra.mxu0 0
        %895 = vmatprep.mubr.bf16.mxu0 0
        %896 = vmatmul.mubr.bf16.gmra.mxu0 %v391
        %v897 = vpop.f32.mrf.mxu0
        %v898 = vadd.f32 %v477, %v897
        %v899 = vpop.f32.mrf.mxu0
        %v900 = vadd.f32 %v481, %v899
        %v901 = vpop.f32.mrf.mxu0
        %v902 = vpop.f32.mrf.mxu0
        %903 = vdwg.mxu0
        %904 = vmatprep.subr.bf16.mxu0 0
        %905 = vmatpush1.bf16.msra.mxu0 %v724
        %906 = vmatprep.subr.bf16.mxu0 0
        %907 = vmatpush1.bf16.msra.mxu0 %v717
        %908 = vmatprep.subr.bf16.mxu0 0
        %909 = vmatpush1.bf16.msra.mxu0 %v710
        %910 = vmatprep.subr.bf16.mxu0 0
        %911 = vmatpush1.bf16.msra.mxu0 %v703
        %912 = vmatprep.subr.bf16.mxu0 0
        %913 = vmatpush1.bf16.msra.mxu0 %v696
        %914 = vmatprep.subr.bf16.mxu0 0
        %915 = vmatpush1.bf16.msra.mxu0 %v689
        %916 = vmatprep.subr.bf16.mxu0 0
        %917 = vmatpush1.bf16.msra.mxu0 %v682
        %918 = vmatprep.subr.bf16.mxu0 0
        %919 = vmatpush1.bf16.msra.mxu0 %v675
        %920 = vmatprep.subr.bf16.mxu0 0
        %921 = vmatpush2.bf16.msra.mxu0 0
        %922 = vmatprep.subr.bf16.mxu0 0
        %923 = vmatpush2.bf16.msra.mxu0 0
        %924 = vmatprep.subr.bf16.mxu0 0
        %925 = vmatpush2.bf16.msra.mxu0 0
        %926 = vmatprep.subr.bf16.mxu0 0
        %927 = vmatpush2.bf16.msra.mxu0 0
        %928 = vmatprep.subr.bf16.mxu0 0
        %929 = vmatpush2.bf16.msra.mxu0 0
        %930 = vmatprep.subr.bf16.mxu0 0
        %931 = vmatpush2.bf16.msra.mxu0 0
        %932 = vmatprep.subr.bf16.mxu0 0
        %933 = vmatpush2.bf16.msra.mxu0 0
        %934 = vmatprep.subr.bf16.mxu0 0
        %935 = vmatpush2.bf16.msra.mxu0 0
        %936 = vmatprep.mubr.bf16.mxu0 0
        %937 = vmatmul.mubr.bf16.gmra.mxu0 %v391
        %v938 = vpop.f32.mrf.mxu0
        %v939 = vadd.f32 %v485, %v938
        %v940 = vpop.f32.mrf.mxu0
        %v941 = vpop.f32.mrf.mxu0
        %v942 = vpop.f32.mrf.mxu0
        %943 = vdwg.mxu0
        %v944 = vand.u32 2147483647, %v816
        %v945 = vand.u32 2147483647, %v818
        %v946 = vand.u32 2147483647, %v857
        %v947 = vand.u32 2147483647, %v859
        %v948 = vand.u32 2147483647, %v898
        %v949 = vand.u32 2147483647, %v900
        %v950 = vand.u32 2147483647, %v939
        %v951 = vsub.f32 0.0, %v944
        %v952 = vsub.f32 0.0, %v945
        %v953 = vsub.f32 0.0, %v946
        %v954 = vsub.f32 0.0, %v947
        %v955 = vsub.f32 0.0, %v948
        %v956 = vsub.f32 0.0, %v949
        %v957 = vsub.f32 0.0, %v950
        %v958 = vmul.f32 %v951, 1.442695
        %v959 = vpow.pop %v958
        %v960 = vmul.f32 %v952, 1.442695
        %v961 = vpow.pop %v960
        %v962 = vmul.f32 %v953, 1.442695
        %v963 = vpow.pop %v962
        %v964 = vmul.f32 %v954, 1.442695
        %v965 = vpow.pop %v964
        %v966 = vmul.f32 %v955, 1.442695
        %v967 = vpow.pop %v966
        %v968 = vmul.f32 %v956, 1.442695
        %v969 = vpow.pop %v968
        %v970 = vmul.f32 %v957, 1.442695
        %v971 = vpow.pop %v970
        %972 = vst [vmem:[%s312] sm:$0xff] %v816
        %973 = vst [vmem:[%s312 + $0x8] sm:$0xff] %v818
        %974 = vst [vmem:[%s312 + $0x10] sm:$0xff] %v857
        %975 = vst [vmem:[%s312 + $0x18] sm:$0xff] %v859
        %976 = vst [vmem:[%s312 + $0x20] sm:$0xff] %v898
        %977 = vst [vmem:[%s312 + $0x28] sm:$0xff] %v900
        %978 = vst [vmem:[%s312 + $0x30] sm:$0xff] %v939
        %v979 = vadd.f32 %v959, 1.0
        %v980 = vadd.f32 %v961, 1.0
        %v981 = vadd.f32 %v963, 1.0
        %v982 = vadd.f32 %v965, 1.0
        %v983 = vadd.f32 %v967, 1.0
        %v984 = vadd.f32 %v969, 1.0
        %v985 = vadd.f32 %v971, 1.0
        %v986 = vrcp.pop %v979
        %v987 = vmul.f32 1.0, %v986
        %v988 = vrcp.pop %v980
        %v989 = vmul.f32 1.0, %v988
        %v990 = vrcp.pop %v981
        %v991 = vmul.f32 1.0, %v990
        %v992 = vrcp.pop %v982
        %v993 = vmul.f32 1.0, %v992
        %v994 = vrcp.pop %v983
        %v995 = vmul.f32 1.0, %v994
        %v996 = vrcp.pop %v984
        %v997 = vmul.f32 1.0, %v996
        %v998 = vrcp.pop %v985
        %v999 = vmul.f32 1.0, %v998
        %vm1000 = vcmp.ge.f32.partialorder %v816, 0.0
        %vm1001 = vcmp.ge.f32.partialorder %v818, 0.0
        %vm1002 = vcmp.ge.f32.partialorder %v857, 0.0
        %vm1003 = vcmp.ge.f32.partialorder %v859, 0.0
        %vm1004 = vcmp.ge.f32.partialorder %v898, 0.0
        %vm1005 = vcmp.ge.f32.partialorder %v900, 0.0
        %vm1006 = vcmp.ge.f32.partialorder %v939, 0.0
        %v1007 = vmul.f32 %v959, %v987
        %v1008 = vmul.f32 %v961, %v989
        %v1009 = vmul.f32 %v963, %v991
        %v1010 = vmul.f32 %v965, %v993
        %v1011 = vmul.f32 %v967, %v995
        %v1012 = vmul.f32 %v969, %v997
        %v1013 = vmul.f32 %v971, %v999
        %v1014 = vsel %vm1000, %v987, %v1007
        %v1015 = vsel %vm1001, %v989, %v1008
        %v1016 = vsel %vm1002, %v991, %v1009
        %v1017 = vsel %vm1003, %v993, %v1010
        %v1018 = vsel %vm1004, %v995, %v1011
        %v1019 = vsel %vm1005, %v997, %v1012
        %v1020 = vsel %vm1006, %v999, %v1013
        %1021 = vst [vmem:[%s319] sm:$0xff] %v1014
        %1022 = vst [vmem:[%s319 + $0x8] sm:$0xff] %v1015
        %1023 = vst [vmem:[%s319 + $0x10] sm:$0xff] %v1016
        %1024 = vst [vmem:[%s319 + $0x18] sm:$0xff] %v1017
        %1025 = vst [vmem:[%s319 + $0x20] sm:$0xff] %v1018
        %1026 = vst [vmem:[%s319 + $0x28] sm:$0xff] %v1019
        %1027 = vst [vmem:[%s319 + $0x30] sm:$0xff] %v1020
        %s1028 = sand.u32 %s147, 1
        %s1029 = scalar_lea.sflag [#allocation4], %s1028
        %s1030 = sand.u32 %s147, 1
        %s1031 = smul.addr %s1030, 56
        %s1032 = scalar_lea.vmem [#allocation10], %s1031
        %s1033 = sand.u32 %s173, 1
        %s1034 = scalar_lea.sflag [#allocation12], %s1033
        %s1035 = sand.u32 %s173, 1
        %s1036 = smul.addr %s1035, 56
        %s1037 = scalar_lea.vmem [#allocation11], %s1036
        // Predicated region
        $region57: #{tpu_custom_call.1} parent=39 // pred_check
          %p1038 = pneg %p157
        $region58: #{tpu_custom_call.1} parent=39 // pred_check_branch
          %1040 = sbr.rel (%p1038) target = $region60
        $region59: #{tpu_custom_call.1} parent=39 // pred_region
          %s1042 = ssub.s32 896, 896
          %1043 = vsyncadd %s1029, %s1042
          %s1044 = smul.addr %s29, 7
          %s1045 = smul.addr %s1044, 128
          %s1046 = scalar_lea.hbm %s5, %s1045
          %s1048 = sshll.u32 %s1032, 4
          %s1049 = int_to_ptr.vmem [resolvable:$true] %s1048
          %1051 = dma.vmem_to_hbm [thread:$0]  %s1049, 896, %s1046, %s1029
        $region60: #{tpu_custom_call.1} parent=39 // pred_fallthru
          _
        // Predicated region
        $region61: #{tpu_custom_call.1} parent=39 // pred_check
          %p1052 = pneg %p183
        $region62: #{tpu_custom_call.1} parent=39 // pred_check_branch
          %1054 = sbr.rel (%p1052) target = $region64
        $region63: #{tpu_custom_call.1} parent=39 // pred_region
          %s1056 = ssub.s32 896, 896
          %1057 = vsyncadd %s1034, %s1056
          %s1058 = smul.addr %s29, 7
          %s1059 = smul.addr %s1058, 128
          %s1060 = scalar_lea.hbm %s6, %s1059
          %s1062 = sshll.u32 %s1037, 4
          %s1063 = int_to_ptr.vmem [resolvable:$true] %s1062
          %1065 = dma.vmem_to_hbm [thread:$0]  %s1063, 896, %s1060, %s1034
        $region64: #{tpu_custom_call.1} parent=39 // pred_fallthru
          _
      $region40: #{tpu_custom_call.1} parent=5 // pred_fallthru
        _
      %p1066 = scmp.le.s32.totalorder 2, %s24
      // Predicated region
      $region65: #{tpu_custom_call.1} parent=5 // pred_check
        %p1067 = pneg %p1066
      $region66: #{tpu_custom_call.1} parent=5 // pred_check_branch
        %1069 = sbr.rel (%p1067) target = $region68
      $region67: #{tpu_custom_call.1} parent=5 // pred_region
        %s1070 = ssub.s32 %s24, 2
        // Predicated region
        $region69: #{tpu_custom_call.1} parent=67 // pred_check
          %p1071 = pneg %p163
        $region70: #{tpu_custom_call.1} parent=67 // pred_check_branch
          %1073 = sbr.rel (%p1071) target = $region72
        $region71: #{tpu_custom_call.1} parent=67 // pred_region
          %s1074 = sand.u32 %s148, 1
          %s1075 = scalar_lea.sflag [#allocation4], %s1074
          %s1076 = sand.u32 %s148, 1
          %s1077 = smul.addr %s1076, 56
          %s1078 = scalar_lea.vmem [#allocation10], %s1077
          %1079 = dma.done %s1075, 896
        $region72: #{tpu_custom_call.1} parent=67 // pred_fallthru
          _
        // Predicated region
        $region73: #{tpu_custom_call.1} parent=67 // pred_check
          %p1080 = pneg %p189
        $region74: #{tpu_custom_call.1} parent=67 // pred_check_branch
          %1082 = sbr.rel (%p1080) target = $region76
        $region75: #{tpu_custom_call.1} parent=67 // pred_region
          %s1083 = sand.u32 %s174, 1
          %s1084 = scalar_lea.sflag [#allocation12], %s1083
          %s1085 = sand.u32 %s174, 1
          %s1086 = smul.addr %s1085, 56
          %s1087 = scalar_lea.vmem [#allocation11], %s1086
          %1088 = dma.done %s1084, 896
        $region76: #{tpu_custom_call.1} parent=67 // pred_fallthru
          _
      $region68: #{tpu_custom_call.1} parent=5 // pred_fallthru
        _
    $region6: #{tpu_custom_call.1} parent=1 // loop_footer
      %s28 = sadd.s32 1, %s24
    $region7: #{tpu_custom_call.1} parent=1 // loop_footer_branch
      %23 = sbr.rel target = $region3
    $region8: #{tpu_custom_call.1} parent=1 // loop_exit
      _
    %1089 = vsyncpa [#allocation3], 1
    %s1090 = scalar_lea.sflag [#allocation3], 1
    %1091 = vsyncpa %s1090, 1
    %1092 = vsyncpa [#allocation6], 1
    %1093 = vsyncpa [#allocation9], 1
    %1094 = vsyncpa [#allocation4], 1
    %s1095 = scalar_lea.sflag [#allocation4], 1
    %1096 = vsyncpa %s1095, 1
    %1097 = vsyncpa [#allocation12], 1
    %s1098 = scalar_lea.sflag [#allocation12], 1
    %1099 = vsyncpa %s1098, 1

</llo_original>
